<compile_context>
chip_gen: v6e
topology: v6e:2x2x1
jax: 0.10.0
libtpu: 0.0.40
codegen_flags: <defaults>
</compile_context>

<pallas_src>
import functools

import jax
import jax.numpy as jnp
from jax.experimental import pallas as pl
from jax.experimental.pallas import tpu as pltpu


def classifier_mask_kernel(
    x_ref,      # VMEM (B, D)    f32 : flattened input
    w1_ref,     # VMEM (D, HID)  f32
    b1_ref,     # VMEM (1, HID)  f32
    w2_ref,     # VMEM (HID, E)  f32
    b2_ref,     # VMEM (1, E)    f32
    em_ref,     # VMEM (2, E)    f32 : nn.Embedding(2, emb) table
    out_ref,    # VMEM (B, E)    f32
    fea_ref,    # VMEM (B, HID)  f32
    mask0_ref,  # VMEM (1, E)    f32 : self.mask (task-0 mask)
    *,
    t: int,
    s: float,
):
    # ---- synthetic classifier (training mode: returns out and fea) ----
    # f32 operands, f32 accumulation on the MXU.
    fea = jnp.maximum(
        jnp.dot(x_ref[...], w1_ref[...], preferred_element_type=jnp.float32)
        + b1_ref[...],
        0.0,
    )
    logits = (
        jnp.dot(fea, w2_ref[...], preferred_element_type=jnp.float32)
        + b2_ref[...]
    )

    # ---- sigmoid(em * s) for both rows in one EUP pass (overflow-safe) ----
    # sigmoid(z) = 0.5 * (tanh(z/2) + 1)
    sig = 0.5 * (jnp.tanh((0.5 * s) * em_ref[...]) + 1.0)   # (2, E)

    mask0_ref[...] = sig[0:1, :]                 # task-0 mask (self.mask)
    out_ref[...] = logits * sig[t:t + 1, :]      # (B,E) * (1,E) broadcast
    fea_ref[...] = fea


def classifier_mask_forward(x, t, params, s=100.0):
    """x: (B, C, H, W) float32; t: python int task id."""
    w1, b1, w2, b2, em = params
    B = x.shape[0]
    x_flat = x.reshape(B, -1)            # row-major == torch .view
    HID = w1.shape[1]
    E = w2.shape[1]

    # t is static at the call site; clamp to the embedding table's rows so an
    # out-of-range id can never read out-of-bounds VMEM.
    t_static = max(0, min(int(t), em.shape[0] - 1))

    kernel = functools.partial(classifier_mask_kernel, t=t_static, s=float(s))

    out, fea, mask0 = pl.pallas_call(
        kernel,
        # Grid-less single invocation: whole-array VMEM blocks (total
        # footprint ~300 KiB, trivially within VMEM on v5e/v6e/v7x).
        in_specs=[
            pl.BlockSpec(memory_space=pltpu.VMEM),   # x
            pl.BlockSpec(memory_space=pltpu.VMEM),   # w1
            pl.BlockSpec(memory_space=pltpu.VMEM),   # b1
            pl.BlockSpec(memory_space=pltpu.VMEM),   # w2
            pl.BlockSpec(memory_space=pltpu.VMEM),   # b2
            pl.BlockSpec(memory_space=pltpu.VMEM),   # em
        ],
        out_specs=(
            pl.BlockSpec(memory_space=pltpu.VMEM),
            pl.BlockSpec(memory_space=pltpu.VMEM),
            pl.BlockSpec(memory_space=pltpu.VMEM),
        ),
        out_shape=(
            jax.ShapeDtypeStruct((B, E), jnp.float32),
            jax.ShapeDtypeStruct((B, HID), jnp.float32),
            jax.ShapeDtypeStruct((1, E), jnp.float32),
        ),
    )(x_flat, w1, b1, w2, b2, em)

    return out, fea, mask0


def _reference_forward(x, t, params, s=100.0):
    """Pure-JAX f32 reference mirroring the PyTorch semantics."""
    w1, b1, w2, b2, em = params
    x_flat = x.reshape(x.shape[0], -1)
    fea = jnp.maximum(x_flat @ w1 + b1, 0.0)
    logits = fea @ w2 + b2
    mask0 = jax.nn.sigmoid(em[0:1, :] * s)
    mask_t = jax.nn.sigmoid(em[t:t + 1, :] * s)
    return logits * mask_t, fea, mask0


if __name__ == "__main__":
    # Small shapes: batch=2, channels=4, spatial=16, hidden=32, emb=128
    B, C, Himg, Wimg = 2, 4, 16, 16
    D = C * Himg * Wimg            # 1024
    HID = 32
    EMB = 128
    TASK = 1
    S = 100.0

    key = jax.random.PRNGKey(0)
    kx, k1, k2, k3, k4, k5 = jax.random.split(key, 6)

    x = jax.random.normal(kx, (B, C, Himg, Wimg), dtype=jnp.float32)

    # Deterministic synthetic parameters (classifier weights + embedding).
    w1 = jax.random.normal(k1, (D, HID), dtype=jnp.float32) * 0.02
    b1 = jax.random.normal(k2, (1, HID), dtype=jnp.float32) * 0.02
    w2 = jax.random.normal(k3, (HID, EMB), dtype=jnp.float32) * 0.02
    b2 = jax.random.normal(k4, (1, EMB), dtype=jnp.float32) * 0.02
    em = jax.random.normal(k5, (2, EMB), dtype=jnp.float32) * 0.05  # Embedding(2, emb)
    params = (w1, b1, w2, b2, em)

    out, fea, mask0 = classifier_mask_forward(x, TASK, params, s=S)
    jax.block_until_ready((out, fea, mask0))

    # Sanity check against pure-JAX f32 reference.  Matmuls are f32 in the
    # kernel now; small MXU-pass differences vs. XLA's default precision are
    # covered by a modest tolerance.  Mask path is exact elementwise f32.
    ref_out, ref_fea, ref_mask0 = _reference_forward(x, TASK, params, s=S)
    assert out.shape == ref_out.shape and fea.shape == ref_fea.shape
    assert jnp.allclose(out, ref_out, atol=5e-3, rtol=5e-3)
    assert jnp.allclose(fea, ref_fea, atol=5e-3, rtol=5e-3)
    assert jnp.allclose(mask0, ref_mask0, atol=1e-4, rtol=1e-4)

    print("KERNEL_OK")
</pallas_src>

<mosaic_0001>
module attributes {stable_mosaic.version = 11 : i64} {
  func.func @classifier_mask_kernel(%arg0: memref<2x1024xf32, #tpu.memory_space<vmem>>, %arg1: memref<1024x32xf32, #tpu.memory_space<vmem>>, %arg2: memref<1x32xf32, #tpu.memory_space<vmem>>, %arg3: memref<32x128xf32, #tpu.memory_space<vmem>>, %arg4: memref<1x128xf32, #tpu.memory_space<vmem>>, %arg5: memref<2x128xf32, #tpu.memory_space<vmem>>, %arg6: memref<2x128xf32, #tpu.memory_space<vmem>>, %arg7: memref<2x32xf32, #tpu.memory_space<vmem>>, %arg8: memref<1x128xf32, #tpu.memory_space<vmem>>) attributes {dimension_semantics = [], scalar_prefetch = 0 : i64, scratch_operands = 0 : i64, tpu.core_type = #tpu.core_type<tc>} {
    %c0 = arith.constant 0 : index
    %c0_0 = arith.constant 0 : index
    %0 = vector.load %arg0[%c0, %c0_0] : memref<2x1024xf32, #tpu.memory_space<vmem>>, vector<2x1024xf32>
    %c0_1 = arith.constant 0 : index
    %c0_2 = arith.constant 0 : index
    %1 = vector.load %arg1[%c0_1, %c0_2] : memref<1024x32xf32, #tpu.memory_space<vmem>>, vector<1024x32xf32>
    %cst = arith.constant dense<0.000000e+00> : vector<2x32xf32>
    %2 = tpu.matmul %0, %1, %cst {dimension_numbers = #tpu.dot_dimension_numbers<[1], [0], [0], [1], [0, 0, 1, 1], [], []>} : vector<2x1024xf32>, vector<1024x32xf32>, vector<2x32xf32> -> vector<2x32xf32>
    %c0_3 = arith.constant 0 : index
    %c0_4 = arith.constant 0 : index
    %3 = vector.load %arg2[%c0_3, %c0_4] : memref<1x32xf32, #tpu.memory_space<vmem>>, vector<1x32xf32>
    %4 = vector.broadcast %3 : vector<1x32xf32> to vector<2x32xf32>
    %5 = arith.addf %2, %4 : vector<2x32xf32>
    %cst_5 = arith.constant 0.000000e+00 : f32
    %6 = vector.broadcast %cst_5 : f32 to vector<2x32xf32>
    %7 = arith.maximumf %5, %6 : vector<2x32xf32>
    %c0_6 = arith.constant 0 : index
    %c0_7 = arith.constant 0 : index
    %8 = vector.load %arg3[%c0_6, %c0_7] : memref<32x128xf32, #tpu.memory_space<vmem>>, vector<32x128xf32>
    %cst_8 = arith.constant dense<0.000000e+00> : vector<2x128xf32>
    %9 = tpu.matmul %7, %8, %cst_8 {dimension_numbers = #tpu.dot_dimension_numbers<[1], [0], [0], [1], [0, 0, 1, 1], [], []>} : vector<2x32xf32>, vector<32x128xf32>, vector<2x128xf32> -> vector<2x128xf32>
    %c0_9 = arith.constant 0 : index
    %c0_10 = arith.constant 0 : index
    %10 = vector.load %arg4[%c0_9, %c0_10] : memref<1x128xf32, #tpu.memory_space<vmem>>, vector<1x128xf32>
    %11 = vector.broadcast %10 : vector<1x128xf32> to vector<2x128xf32>
    %12 = arith.addf %9, %11 : vector<2x128xf32>
    %c0_11 = arith.constant 0 : index
    %c0_12 = arith.constant 0 : index
    %13 = vector.load %arg5[%c0_11, %c0_12] : memref<2x128xf32, #tpu.memory_space<vmem>>, vector<2x128xf32>
    %cst_13 = arith.constant 5.000000e+01 : f32
    %14 = vector.broadcast %cst_13 : f32 to vector<2x128xf32>
    %15 = arith.mulf %14, %13 : vector<2x128xf32>
    %16 = math.tanh %15 : vector<2x128xf32>
    %cst_14 = arith.constant 1.000000e+00 : f32
    %17 = vector.broadcast %cst_14 : f32 to vector<2x128xf32>
    %18 = arith.addf %16, %17 : vector<2x128xf32>
    %cst_15 = arith.constant 5.000000e-01 : f32
    %19 = vector.broadcast %cst_15 : f32 to vector<2x128xf32>
    %20 = arith.mulf %19, %18 : vector<2x128xf32>
    %21 = vector.extract_strided_slice %20 {offsets = [0, 0], sizes = [1, 128], strides = [1, 1]} : vector<2x128xf32> to vector<1x128xf32>
    %c0_16 = arith.constant 0 : index
    %c0_17 = arith.constant 0 : index
    %22 = vector.load %arg8[%c0_16, %c0_17] : memref<1x128xf32, #tpu.memory_space<vmem>>, vector<1x128xf32>
    tpu.vector_store %arg8[%c0_16, %c0_17], %21 {strides = array<i32>} : memref<1x128xf32, #tpu.memory_space<vmem>>, vector<1x128xf32>,
    %23 = vector.extract_strided_slice %20 {offsets = [1, 0], sizes = [1, 128], strides = [1, 1]} : vector<2x128xf32> to vector<1x128xf32>
    %24 = vector.broadcast %23 : vector<1x128xf32> to vector<2x128xf32>
    %25 = arith.mulf %12, %24 : vector<2x128xf32>
    %c0_18 = arith.constant 0 : index
    %c0_19 = arith.constant 0 : index
    %26 = vector.load %arg6[%c0_18, %c0_19] : memref<2x128xf32, #tpu.memory_space<vmem>>, vector<2x128xf32>
    tpu.vector_store %arg6[%c0_18, %c0_19], %25 {strides = array<i32>} : memref<2x128xf32, #tpu.memory_space<vmem>>, vector<2x128xf32>,
    %c0_20 = arith.constant 0 : index
    %c0_21 = arith.constant 0 : index
    %27 = vector.load %arg7[%c0_20, %c0_21] : memref<2x32xf32, #tpu.memory_space<vmem>>, vector<2x32xf32>
    tpu.vector_store %arg7[%c0_20, %c0_21], %7 {strides = array<i32>} : memref<2x32xf32, #tpu.memory_space<vmem>>, vector<2x32xf32>,
    return
  }
}

</mosaic_0001>

<llo_original>
// kernel: tpu_custom_call.1
$region0: #{tpu_custom_call.1}
  #allocation0 [shape = 'u32[]', space=smem, size = 0x4, offset = 0x4, fixed_abs, tag = 'smem constant byte address 0x4 - core index']
  #allocation1 [shape = 'u32[144,128]{1,0:T(1,128)}', space=vmem, size = 0x12000, scoped, tag = 'internal scratch']
  %s0 = inlined_call_operand.vmem [shape: f32[2,1024], index: 0, kind: input, shape index: {}]
  %s1 = inlined_call_operand.vmem [shape: f32[1024,32], index: 1, kind: input, shape index: {}]
  %s2 = inlined_call_operand.vmem [shape: f32[1,32], index: 2, kind: input, shape index: {}]
  %s3 = inlined_call_operand.vmem [shape: f32[32,128], index: 3, kind: input, shape index: {}]
  %s4 = inlined_call_operand.vmem [shape: f32[1,128], index: 4, kind: input, shape index: {}]
  %s5 = inlined_call_operand.vmem [shape: f32[2,128], index: 5, kind: input, shape index: {}]
  %s6 = inlined_call_operand.hbm [shape: f32[2,128], index: 6, kind: output, shape index: {0}]
  %s7 = inlined_call_operand.hbm [shape: f32[2,32], index: 7, kind: output, shape index: {1}]
  %s8 = inlined_call_operand.hbm [shape: f32[1,128], index: 8, kind: output, shape index: {2}]
  %9 = xla_tuple %s6, %s7, %s8
  %s10 = sld [smem:[#allocation0]]
  $region50: #{tpu_custom_call.1} parent=0
    _
  %s12 = ssub.s32 1, %s10
  %s13 = scalar_select 0, %s12, %s10
  $region1: #{tpu_custom_call.1} parent=0
    #allocation2 [shape = 'u8[1024]{0}', space=vmem, size = 0x400, scoped, tag = 'output window, operand 0, single buffered']
    #allocation3 [shape = 's32[1]{0}', space=sflag, size = 0x4, scoped, tag = 'scoped memory for tpu_custom_call.1']
    #allocation4 [shape = 'u8[1024]{0}', space=vmem, size = 0x400, scoped, tag = 'output window, operand 1, single buffered']
    #allocation5 [shape = 's32[1]{0}', space=sflag, size = 0x4, scoped, tag = 'scoped memory for tpu_custom_call.1']
    #allocation6 [shape = 'u8[512]{0}', space=vmem, size = 0x400, scoped, tag = 'output window, operand 2, single buffered']
    %14 = vsyncpa [#allocation3], 0
    %15 = vsyncpa [#allocation5], 0
    // Predicated region
    $region2: #{tpu_custom_call.1} parent=1 // pred_check
      _
    $region3: #{tpu_custom_call.1} parent=1 // pred_check_branch
      %17 = sbr.rel (0) target = $region5
    $region4: #{tpu_custom_call.1} parent=1 // pred_region
      _
    $region5: #{tpu_custom_call.1} parent=1 // pred_fallthru
      _
    // Predicated region
    $region6: #{tpu_custom_call.1} parent=1 // pred_check
      _
    $region7: #{tpu_custom_call.1} parent=1 // pred_check_branch
      %19 = sbr.rel (0) target = $region9
    $region8: #{tpu_custom_call.1} parent=1 // pred_region
      _
    $region9: #{tpu_custom_call.1} parent=1 // pred_fallthru
      _
    // Predicated region
    $region10: #{tpu_custom_call.1} parent=1 // pred_check
      _
    $region11: #{tpu_custom_call.1} parent=1 // pred_check_branch
      %21 = sbr.rel (0) target = $region13
    $region12: #{tpu_custom_call.1} parent=1 // pred_region
      _
    $region13: #{tpu_custom_call.1} parent=1 // pred_fallthru
      _
    // Predicated region
    $region14: #{tpu_custom_call.1} parent=1 // pred_check
      _
    $region15: #{tpu_custom_call.1} parent=1 // pred_check_branch
      %23 = sbr.rel (0) target = $region17
    $region16: #{tpu_custom_call.1} parent=1 // pred_region
      _
    $region17: #{tpu_custom_call.1} parent=1 // pred_fallthru
      _
    // Predicated region
    $region18: #{tpu_custom_call.1} parent=1 // pred_check
      _
    $region19: #{tpu_custom_call.1} parent=1 // pred_check_branch
      %25 = sbr.rel (0) target = $region21
    $region20: #{tpu_custom_call.1} parent=1 // pred_region
      _
    $region21: #{tpu_custom_call.1} parent=1 // pred_fallthru
      _
    // Predicated region
    $region22: #{tpu_custom_call.1} parent=1 // pred_check
      _
    $region23: #{tpu_custom_call.1} parent=1 // pred_check_branch
      %27 = sbr.rel (0) target = $region25
    $region24: #{tpu_custom_call.1} parent=1 // pred_region
      _
    $region25: #{tpu_custom_call.1} parent=1 // pred_fallthru
      _
    %v28 = vld [vmem:[%s0] sm:$0xff]
    %v29 = vld [vmem:[%s0 + $0x8] sm:$0xff]
    %v30 = vld [vmem:[%s1] sm:$0xff]
    %v31 = vld [vmem:[%s1 + $0x8] sm:$0xff]
    %v32 = vld [vmem:[%s1 + $0x10] sm:$0xff]
    %v33 = vld [vmem:[%s1 + $0x18] sm:$0xff]
    %v34 = vld [vmem:[%s1 + $0x20] sm:$0xff]
    %v35 = vld [vmem:[%s1 + $0x28] sm:$0xff]
    %v36 = vld [vmem:[%s1 + $0x30] sm:$0xff]
    %v37 = vld [vmem:[%s1 + $0x38] sm:$0xff]
    %v38 = vld [vmem:[%s1 + $0x40] sm:$0xff]
    %v39 = vld [vmem:[%s1 + $0x48] sm:$0xff]
    %v40 = vld [vmem:[%s1 + $0x50] sm:$0xff]
    %v41 = vld [vmem:[%s1 + $0x58] sm:$0xff]
    %v42 = vld [vmem:[%s1 + $0x60] sm:$0xff]
    %v43 = vld [vmem:[%s1 + $0x68] sm:$0xff]
    %v44 = vld [vmem:[%s1 + $0x70] sm:$0xff]
    %v45 = vld [vmem:[%s1 + $0x78] sm:$0xff]
    %v46 = vld [vmem:[%s1 + $0x80] sm:$0xff]
    %v47 = vld [vmem:[%s1 + $0x88] sm:$0xff]
    %v48 = vld [vmem:[%s1 + $0x90] sm:$0xff]
    %v49 = vld [vmem:[%s1 + $0x98] sm:$0xff]
    %v50 = vld [vmem:[%s1 + $0xa0] sm:$0xff]
    %v51 = vld [vmem:[%s1 + $0xa8] sm:$0xff]
    %v52 = vld [vmem:[%s1 + $0xb0] sm:$0xff]
    %v53 = vld [vmem:[%s1 + $0xb8] sm:$0xff]
    %v54 = vld [vmem:[%s1 + $0xc0] sm:$0xff]
    %v55 = vld [vmem:[%s1 + $0xc8] sm:$0xff]
    %v56 = vld [vmem:[%s1 + $0xd0] sm:$0xff]
    %v57 = vld [vmem:[%s1 + $0xd8] sm:$0xff]
    %v58 = vld [vmem:[%s1 + $0xe0] sm:$0xff]
    %v59 = vld [vmem:[%s1 + $0xe8] sm:$0xff]
    %v60 = vld [vmem:[%s1 + $0xf0] sm:$0xff]
    %v61 = vld [vmem:[%s1 + $0xf8] sm:$0xff]
    %v62 = vld [vmem:[%s1 + $0x100] sm:$0xff]
    %v63 = vld [vmem:[%s1 + $0x108] sm:$0xff]
    %v64 = vld [vmem:[%s1 + $0x110] sm:$0xff]
    %v65 = vld [vmem:[%s1 + $0x118] sm:$0xff]
    %v66 = vld [vmem:[%s1 + $0x120] sm:$0xff]
    %v67 = vld [vmem:[%s1 + $0x128] sm:$0xff]
    %v68 = vld [vmem:[%s1 + $0x130] sm:$0xff]
    %v69 = vld [vmem:[%s1 + $0x138] sm:$0xff]
    %v70 = vld [vmem:[%s1 + $0x140] sm:$0xff]
    %v71 = vld [vmem:[%s1 + $0x148] sm:$0xff]
    %v72 = vld [vmem:[%s1 + $0x150] sm:$0xff]
    %v73 = vld [vmem:[%s1 + $0x158] sm:$0xff]
    %v74 = vld [vmem:[%s1 + $0x160] sm:$0xff]
    %v75 = vld [vmem:[%s1 + $0x168] sm:$0xff]
    %v76 = vld [vmem:[%s1 + $0x170] sm:$0xff]
    %v77 = vld [vmem:[%s1 + $0x178] sm:$0xff]
    %v78 = vld [vmem:[%s1 + $0x180] sm:$0xff]
    %v79 = vld [vmem:[%s1 + $0x188] sm:$0xff]
    %v80 = vld [vmem:[%s1 + $0x190] sm:$0xff]
    %v81 = vld [vmem:[%s1 + $0x198] sm:$0xff]
    %v82 = vld [vmem:[%s1 + $0x1a0] sm:$0xff]
    %v83 = vld [vmem:[%s1 + $0x1a8] sm:$0xff]
    %v84 = vld [vmem:[%s1 + $0x1b0] sm:$0xff]
    %v85 = vld [vmem:[%s1 + $0x1b8] sm:$0xff]
    %v86 = vld [vmem:[%s1 + $0x1c0] sm:$0xff]
    %v87 = vld [vmem:[%s1 + $0x1c8] sm:$0xff]
    %v88 = vld [vmem:[%s1 + $0x1d0] sm:$0xff]
    %v89 = vld [vmem:[%s1 + $0x1d8] sm:$0xff]
    %v90 = vld [vmem:[%s1 + $0x1e0] sm:$0xff]
    %v91 = vld [vmem:[%s1 + $0x1e8] sm:$0xff]
    %v92 = vld [vmem:[%s1 + $0x1f0] sm:$0xff]
    %v93 = vld [vmem:[%s1 + $0x1f8] sm:$0xff]
    %v94 = vld [vmem:[%s1 + $0x200] sm:$0xff]
    %v95 = vld [vmem:[%s1 + $0x208] sm:$0xff]
    %v96 = vld [vmem:[%s1 + $0x210] sm:$0xff]
    %v97 = vld [vmem:[%s1 + $0x218] sm:$0xff]
    %v98 = vld [vmem:[%s1 + $0x220] sm:$0xff]
    %v99 = vld [vmem:[%s1 + $0x228] sm:$0xff]
    %v100 = vld [vmem:[%s1 + $0x230] sm:$0xff]
    %v101 = vld [vmem:[%s1 + $0x238] sm:$0xff]
    %v102 = vld [vmem:[%s1 + $0x240] sm:$0xff]
    %v103 = vld [vmem:[%s1 + $0x248] sm:$0xff]
    %v104 = vld [vmem:[%s1 + $0x250] sm:$0xff]
    %v105 = vld [vmem:[%s1 + $0x258] sm:$0xff]
    %v106 = vld [vmem:[%s1 + $0x260] sm:$0xff]
    %v107 = vld [vmem:[%s1 + $0x268] sm:$0xff]
    %v108 = vld [vmem:[%s1 + $0x270] sm:$0xff]
    %v109 = vld [vmem:[%s1 + $0x278] sm:$0xff]
    %v110 = vld [vmem:[%s1 + $0x280] sm:$0xff]
    %v111 = vld [vmem:[%s1 + $0x288] sm:$0xff]
    %v112 = vld [vmem:[%s1 + $0x290] sm:$0xff]
    %v113 = vld [vmem:[%s1 + $0x298] sm:$0xff]
    %v114 = vld [vmem:[%s1 + $0x2a0] sm:$0xff]
    %v115 = vld [vmem:[%s1 + $0x2a8] sm:$0xff]
    %v116 = vld [vmem:[%s1 + $0x2b0] sm:$0xff]
    %v117 = vld [vmem:[%s1 + $0x2b8] sm:$0xff]
    %v118 = vld [vmem:[%s1 + $0x2c0] sm:$0xff]
    %v119 = vld [vmem:[%s1 + $0x2c8] sm:$0xff]
    %v120 = vld [vmem:[%s1 + $0x2d0] sm:$0xff]
    %v121 = vld [vmem:[%s1 + $0x2d8] sm:$0xff]
    %v122 = vld [vmem:[%s1 + $0x2e0] sm:$0xff]
    %v123 = vld [vmem:[%s1 + $0x2e8] sm:$0xff]
    %v124 = vld [vmem:[%s1 + $0x2f0] sm:$0xff]
    %v125 = vld [vmem:[%s1 + $0x2f8] sm:$0xff]
    %v126 = vld [vmem:[%s1 + $0x300] sm:$0xff]
    %v127 = vld [vmem:[%s1 + $0x308] sm:$0xff]
    %v128 = vld [vmem:[%s1 + $0x310] sm:$0xff]
    %v129 = vld [vmem:[%s1 + $0x318] sm:$0xff]
    %v130 = vld [vmem:[%s1 + $0x320] sm:$0xff]
    %v131 = vld [vmem:[%s1 + $0x328] sm:$0xff]
    %v132 = vld [vmem:[%s1 + $0x330] sm:$0xff]
    %v133 = vld [vmem:[%s1 + $0x338] sm:$0xff]
    %v134 = vld [vmem:[%s1 + $0x340] sm:$0xff]
    %v135 = vld [vmem:[%s1 + $0x348] sm:$0xff]
    %v136 = vld [vmem:[%s1 + $0x350] sm:$0xff]
    %v137 = vld [vmem:[%s1 + $0x358] sm:$0xff]
    %v138 = vld [vmem:[%s1 + $0x360] sm:$0xff]
    %v139 = vld [vmem:[%s1 + $0x368] sm:$0xff]
    %v140 = vld [vmem:[%s1 + $0x370] sm:$0xff]
    %v141 = vld [vmem:[%s1 + $0x378] sm:$0xff]
    %v142 = vld [vmem:[%s1 + $0x380] sm:$0xff]
    %v143 = vld [vmem:[%s1 + $0x388] sm:$0xff]
    %v144 = vld [vmem:[%s1 + $0x390] sm:$0xff]
    %v145 = vld [vmem:[%s1 + $0x398] sm:$0xff]
    %v146 = vld [vmem:[%s1 + $0x3a0] sm:$0xff]
    %v147 = vld [vmem:[%s1 + $0x3a8] sm:$0xff]
    %v148 = vld [vmem:[%s1 + $0x3b0] sm:$0xff]
    %v149 = vld [vmem:[%s1 + $0x3b8] sm:$0xff]
    %v150 = vld [vmem:[%s1 + $0x3c0] sm:$0xff]
    %v151 = vld [vmem:[%s1 + $0x3c8] sm:$0xff]
    %v152 = vld [vmem:[%s1 + $0x3d0] sm:$0xff]
    %v153 = vld [vmem:[%s1 + $0x3d8] sm:$0xff]
    %v154 = vld [vmem:[%s1 + $0x3e0] sm:$0xff]
    %v155 = vld [vmem:[%s1 + $0x3e8] sm:$0xff]
    %v156 = vld [vmem:[%s1 + $0x3f0] sm:$0xff]
    %v157 = vld [vmem:[%s1 + $0x3f8] sm:$0xff]
    %v158 = vld [vmem:[%s2] sm:$0x1]
    %v160 = vlaneseq
    %v161 = vshrl.u32 %v160, 7
    %v162 = vsub.s32 0, %v161
    %v163 = vrot.slane %v158, %v162
    %v167 = vcombine.high %v28, %v28
    %v169 = vunpack.c.l.s4 1983009808
    %v170 = vunpack.c.0.s8 %v169
    %v171 = vlaneseq
    %v172 = vshrl.u32 %v171, 7
    %v173 = vsub.s32 %v170, %v172
    %v174 = vrot.slane %v28, %v173
    %v176 = vunpack.c.l.s4 1983009808
    %v177 = vunpack.c.0.s8 %v176
    %v178 = vlaneseq
    %v179 = vshrl.u32 %v178, 7
    %v180 = vsub.s32 %v177, %v179
    %v181 = vrot.slane %v167, %v180
    %v182 = vcombine.high %v174, %v174
    %v183 = vcombine.high %v181, %v181
    %v184 = vcombine.high %v29, %v29
    %v186 = vunpack.c.l.s4 1983009808
    %v187 = vunpack.c.0.s8 %v186
    %v188 = vlaneseq
    %v189 = vshrl.u32 %v188, 7
    %v190 = vsub.s32 %v187, %v189
    %v191 = vrot.slane %v29, %v190
    %v193 = vunpack.c.l.s4 1983009808
    %v194 = vunpack.c.0.s8 %v193
    %v195 = vlaneseq
    %v196 = vshrl.u32 %v195, 7
    %v197 = vsub.s32 %v194, %v196
    %v198 = vrot.slane %v184, %v197
    %v199 = vcombine.high %v191, %v191
    %v200 = vcombine.high %v198, %v198
    %209 = vmatprep.subr.mxu0 0.0
    %210 = vmatpush1.msra.mxu0 %v45
    %211 = vmatprep.subr.mxu0 0.0
    %212 = vmatpush1.msra.mxu0 %v44
    %213 = vmatprep.subr.mxu0 0.0
    %214 = vmatpush1.msra.mxu0 %v43
    %215 = vmatprep.subr.mxu0 0.0
    %216 = vmatpush1.msra.mxu0 %v42
    %217 = vmatprep.subr.mxu0 0.0
    %218 = vmatpush1.msra.mxu0 %v41
    %219 = vmatprep.subr.mxu0 0.0
    %220 = vmatpush1.msra.mxu0 %v40
    %221 = vmatprep.subr.mxu0 0.0
    %222 = vmatpush1.msra.mxu0 %v39
    %223 = vmatprep.subr.mxu0 0.0
    %224 = vmatpush1.msra.mxu0 %v38
    %225 = vmatprep.subr.mxu0 0.0
    %226 = vmatpush1.msra.mxu0 %v37
    %227 = vmatprep.subr.mxu0 0.0
    %228 = vmatpush1.msra.mxu0 %v36
    %229 = vmatprep.subr.mxu0 0.0
    %230 = vmatpush1.msra.mxu0 %v35
    %231 = vmatprep.subr.mxu0 0.0
    %232 = vmatpush1.msra.mxu0 %v34
    %233 = vmatprep.subr.mxu0 0.0
    %234 = vmatpush1.msra.mxu0 %v33
    %235 = vmatprep.subr.mxu0 0.0
    %236 = vmatpush1.msra.mxu0 %v32
    %237 = vmatprep.subr.mxu0 0.0
    %238 = vmatpush1.msra.mxu0 %v31
    %239 = vmatprep.subr.mxu0 0.0
    %240 = vmatpush1.msra.mxu0 %v30
    %241 = vmatprep.subr.mxu0 0.0
    %242 = vmatpush2.msra.mxu0 %v61
    %243 = vmatprep.subr.mxu0 0.0
    %244 = vmatpush2.msra.mxu0 %v60
    %245 = vmatprep.subr.mxu0 0.0
    %246 = vmatpush2.msra.mxu0 %v59
    %247 = vmatprep.subr.mxu0 0.0
    %248 = vmatpush2.msra.mxu0 %v58
    %249 = vmatprep.subr.mxu0 0.0
    %250 = vmatpush2.msra.mxu0 %v57
    %251 = vmatprep.subr.mxu0 0.0
    %252 = vmatpush2.msra.mxu0 %v56
    %253 = vmatprep.subr.mxu0 0.0
    %254 = vmatpush2.msra.mxu0 %v55
    %255 = vmatprep.subr.mxu0 0.0
    %256 = vmatpush2.msra.mxu0 %v54
    %257 = vmatprep.subr.mxu0 0.0
    %258 = vmatpush2.msra.mxu0 %v53
    %259 = vmatprep.subr.mxu0 0.0
    %260 = vmatpush2.msra.mxu0 %v52
    %261 = vmatprep.subr.mxu0 0.0
    %262 = vmatpush2.msra.mxu0 %v51
    %263 = vmatprep.subr.mxu0 0.0
    %264 = vmatpush2.msra.mxu0 %v50
    %265 = vmatprep.subr.mxu0 0.0
    %266 = vmatpush2.msra.mxu0 %v49
    %267 = vmatprep.subr.mxu0 0.0
    %268 = vmatpush2.msra.mxu0 %v48
    %269 = vmatprep.subr.mxu0 0.0
    %270 = vmatpush2.msra.mxu0 %v47
    %271 = vmatprep.subr.mxu0 0.0
    %272 = vmatpush2.msra.mxu0 %v46
    %273 = vmatprep.mubr.f32.mxu0 %v182
    %274 = vmatmul.mubr.f32.gmra.mxu0 %v174
    %v275 = vpop.f32.mrf.mxu0
    %v276 = vadd.f32 %v163, %v275
    %v277 = vpop.f32.mrf.mxu0
    %278 = vdwg.mxu0
    %279 = vmatprep.subr.mxu0 0.0
    %280 = vmatpush1.msra.mxu0 %v77
    %281 = vmatprep.subr.mxu0 0.0
    %282 = vmatpush1.msra.mxu0 %v76
    %283 = vmatprep.subr.mxu0 0.0
    %284 = vmatpush1.msra.mxu0 %v75
    %285 = vmatprep.subr.mxu0 0.0
    %286 = vmatpush1.msra.mxu0 %v74
    %287 = vmatprep.subr.mxu0 0.0
    %288 = vmatpush1.msra.mxu0 %v73
    %289 = vmatprep.subr.mxu0 0.0
    %290 = vmatpush1.msra.mxu0 %v72
    %291 = vmatprep.subr.mxu0 0.0
    %292 = vmatpush1.msra.mxu0 %v71
    %293 = vmatprep.subr.mxu0 0.0
    %294 = vmatpush1.msra.mxu0 %v70
    %295 = vmatprep.subr.mxu0 0.0
    %296 = vmatpush1.msra.mxu0 %v69
    %297 = vmatprep.subr.mxu0 0.0
    %298 = vmatpush1.msra.mxu0 %v68
    %299 = vmatprep.subr.mxu0 0.0
    %300 = vmatpush1.msra.mxu0 %v67
    %301 = vmatprep.subr.mxu0 0.0
    %302 = vmatpush1.msra.mxu0 %v66
    %303 = vmatprep.subr.mxu0 0.0
    %304 = vmatpush1.msra.mxu0 %v65
    %305 = vmatprep.subr.mxu0 0.0
    %306 = vmatpush1.msra.mxu0 %v64
    %307 = vmatprep.subr.mxu0 0.0
    %308 = vmatpush1.msra.mxu0 %v63
    %309 = vmatprep.subr.mxu0 0.0
    %310 = vmatpush1.msra.mxu0 %v62
    %311 = vmatprep.subr.mxu0 0.0
    %312 = vmatpush2.msra.mxu0 %v93
    %313 = vmatprep.subr.mxu0 0.0
    %314 = vmatpush2.msra.mxu0 %v92
    %315 = vmatprep.subr.mxu0 0.0
    %316 = vmatpush2.msra.mxu0 %v91
    %317 = vmatprep.subr.mxu0 0.0
    %318 = vmatpush2.msra.mxu0 %v90
    %319 = vmatprep.subr.mxu0 0.0
    %320 = vmatpush2.msra.mxu0 %v89
    %321 = vmatprep.subr.mxu0 0.0
    %322 = vmatpush2.msra.mxu0 %v88
    %323 = vmatprep.subr.mxu0 0.0
    %324 = vmatpush2.msra.mxu0 %v87
    %325 = vmatprep.subr.mxu0 0.0
    %326 = vmatpush2.msra.mxu0 %v86
    %327 = vmatprep.subr.mxu0 0.0
    %328 = vmatpush2.msra.mxu0 %v85
    %329 = vmatprep.subr.mxu0 0.0
    %330 = vmatpush2.msra.mxu0 %v84
    %331 = vmatprep.subr.mxu0 0.0
    %332 = vmatpush2.msra.mxu0 %v83
    %333 = vmatprep.subr.mxu0 0.0
    %334 = vmatpush2.msra.mxu0 %v82
    %335 = vmatprep.subr.mxu0 0.0
    %336 = vmatpush2.msra.mxu0 %v81
    %337 = vmatprep.subr.mxu0 0.0
    %338 = vmatpush2.msra.mxu0 %v80
    %339 = vmatprep.subr.mxu0 0.0
    %340 = vmatpush2.msra.mxu0 %v79
    %341 = vmatprep.subr.mxu0 0.0
    %342 = vmatpush2.msra.mxu0 %v78
    %343 = vmatprep.mubr.f32.mxu0 %v183
    %344 = vmatmul.mubr.f32.gmra.mxu0 %v181
    %v345 = vpop.f32.mrf.mxu0
    %v346 = vadd.f32 %v276, %v345
    %v347 = vpop.f32.mrf.mxu0
    %348 = vdwg.mxu0
    %349 = vmatprep.subr.mxu0 0.0
    %350 = vmatpush1.msra.mxu0 %v109
    %351 = vmatprep.subr.mxu0 0.0
    %352 = vmatpush1.msra.mxu0 %v108
    %353 = vmatprep.subr.mxu0 0.0
    %354 = vmatpush1.msra.mxu0 %v107
    %355 = vmatprep.subr.mxu0 0.0
    %356 = vmatpush1.msra.mxu0 %v106
    %357 = vmatprep.subr.mxu0 0.0
    %358 = vmatpush1.msra.mxu0 %v105
    %359 = vmatprep.subr.mxu0 0.0
    %360 = vmatpush1.msra.mxu0 %v104
    %361 = vmatprep.subr.mxu0 0.0
    %362 = vmatpush1.msra.mxu0 %v103
    %363 = vmatprep.subr.mxu0 0.0
    %364 = vmatpush1.msra.mxu0 %v102
    %365 = vmatprep.subr.mxu0 0.0
    %366 = vmatpush1.msra.mxu0 %v101
    %367 = vmatprep.subr.mxu0 0.0
    %368 = vmatpush1.msra.mxu0 %v100
    %369 = vmatprep.subr.mxu0 0.0
    %370 = vmatpush1.msra.mxu0 %v99
    %371 = vmatprep.subr.mxu0 0.0
    %372 = vmatpush1.msra.mxu0 %v98
    %373 = vmatprep.subr.mxu0 0.0
    %374 = vmatpush1.msra.mxu0 %v97
    %375 = vmatprep.subr.mxu0 0.0
    %376 = vmatpush1.msra.mxu0 %v96
    %377 = vmatprep.subr.mxu0 0.0
    %378 = vmatpush1.msra.mxu0 %v95
    %379 = vmatprep.subr.mxu0 0.0
    %380 = vmatpush1.msra.mxu0 %v94
    %381 = vmatprep.subr.mxu0 0.0
    %382 = vmatpush2.msra.mxu0 %v125
    %383 = vmatprep.subr.mxu0 0.0
    %384 = vmatpush2.msra.mxu0 %v124
    %385 = vmatprep.subr.mxu0 0.0
    %386 = vmatpush2.msra.mxu0 %v123
    %387 = vmatprep.subr.mxu0 0.0
    %388 = vmatpush2.msra.mxu0 %v122
    %389 = vmatprep.subr.mxu0 0.0
    %390 = vmatpush2.msra.mxu0 %v121
    %391 = vmatprep.subr.mxu0 0.0
    %392 = vmatpush2.msra.mxu0 %v120
    %393 = vmatprep.subr.mxu0 0.0
    %394 = vmatpush2.msra.mxu0 %v119
    %395 = vmatprep.subr.mxu0 0.0
    %396 = vmatpush2.msra.mxu0 %v118
    %397 = vmatprep.subr.mxu0 0.0
    %398 = vmatpush2.msra.mxu0 %v117
    %399 = vmatprep.subr.mxu0 0.0
    %400 = vmatpush2.msra.mxu0 %v116
    %401 = vmatprep.subr.mxu0 0.0
    %402 = vmatpush2.msra.mxu0 %v115
    %403 = vmatprep.subr.mxu0 0.0
    %404 = vmatpush2.msra.mxu0 %v114
    %405 = vmatprep.subr.mxu0 0.0
    %406 = vmatpush2.msra.mxu0 %v113
    %407 = vmatprep.subr.mxu0 0.0
    %408 = vmatpush2.msra.mxu0 %v112
    %409 = vmatprep.subr.mxu0 0.0
    %410 = vmatpush2.msra.mxu0 %v111
    %411 = vmatprep.subr.mxu0 0.0
    %412 = vmatpush2.msra.mxu0 %v110
    %413 = vmatprep.mubr.f32.mxu0 %v199
    %414 = vmatmul.mubr.f32.gmra.mxu0 %v191
    %v415 = vpop.f32.mrf.mxu0
    %v416 = vadd.f32 %v346, %v415
    %v417 = vpop.f32.mrf.mxu0
    %418 = vdwg.mxu0
    %419 = vmatprep.subr.mxu0 0.0
    %420 = vmatpush1.msra.mxu0 %v141
    %421 = vmatprep.subr.mxu0 0.0
    %422 = vmatpush1.msra.mxu0 %v140
    %423 = vmatprep.subr.mxu0 0.0
    %424 = vmatpush1.msra.mxu0 %v139
    %425 = vmatprep.subr.mxu0 0.0
    %426 = vmatpush1.msra.mxu0 %v138
    %427 = vmatprep.subr.mxu0 0.0
    %428 = vmatpush1.msra.mxu0 %v137
    %429 = vmatprep.subr.mxu0 0.0
    %430 = vmatpush1.msra.mxu0 %v136
    %431 = vmatprep.subr.mxu0 0.0
    %432 = vmatpush1.msra.mxu0 %v135
    %433 = vmatprep.subr.mxu0 0.0
    %434 = vmatpush1.msra.mxu0 %v134
    %435 = vmatprep.subr.mxu0 0.0
    %436 = vmatpush1.msra.mxu0 %v133
    %437 = vmatprep.subr.mxu0 0.0
    %438 = vmatpush1.msra.mxu0 %v132
    %439 = vmatprep.subr.mxu0 0.0
    %440 = vmatpush1.msra.mxu0 %v131
    %441 = vmatprep.subr.mxu0 0.0
    %442 = vmatpush1.msra.mxu0 %v130
    %443 = vmatprep.subr.mxu0 0.0
    %444 = vmatpush1.msra.mxu0 %v129
    %445 = vmatprep.subr.mxu0 0.0
    %446 = vmatpush1.msra.mxu0 %v128
    %447 = vmatprep.subr.mxu0 0.0
    %448 = vmatpush1.msra.mxu0 %v127
    %449 = vmatprep.subr.mxu0 0.0
    %450 = vmatpush1.msra.mxu0 %v126
    %451 = vmatprep.subr.mxu0 0.0
    %452 = vmatpush2.msra.mxu0 %v157
    %453 = vmatprep.subr.mxu0 0.0
    %454 = vmatpush2.msra.mxu0 %v156
    %455 = vmatprep.subr.mxu0 0.0
    %456 = vmatpush2.msra.mxu0 %v155
    %457 = vmatprep.subr.mxu0 0.0
    %458 = vmatpush2.msra.mxu0 %v154
    %459 = vmatprep.subr.mxu0 0.0
    %460 = vmatpush2.msra.mxu0 %v153
    %461 = vmatprep.subr.mxu0 0.0
    %462 = vmatpush2.msra.mxu0 %v152
    %463 = vmatprep.subr.mxu0 0.0
    %464 = vmatpush2.msra.mxu0 %v151
    %465 = vmatprep.subr.mxu0 0.0
    %466 = vmatpush2.msra.mxu0 %v150
    %467 = vmatprep.subr.mxu0 0.0
    %468 = vmatpush2.msra.mxu0 %v149
    %469 = vmatprep.subr.mxu0 0.0
    %470 = vmatpush2.msra.mxu0 %v148
    %471 = vmatprep.subr.mxu0 0.0
    %472 = vmatpush2.msra.mxu0 %v147
    %473 = vmatprep.subr.mxu0 0.0
    %474 = vmatpush2.msra.mxu0 %v146
    %475 = vmatprep.subr.mxu0 0.0
    %476 = vmatpush2.msra.mxu0 %v145
    %477 = vmatprep.subr.mxu0 0.0
    %478 = vmatpush2.msra.mxu0 %v144
    %479 = vmatprep.subr.mxu0 0.0
    %480 = vmatpush2.msra.mxu0 %v143
    %481 = vmatprep.subr.mxu0 0.0
    %482 = vmatpush2.msra.mxu0 %v142
    %483 = vmatprep.mubr.f32.mxu0 %v200
    %484 = vmatmul.mubr.f32.gmra.mxu0 %v198
    %v485 = vpop.f32.mrf.mxu0
    %v486 = vadd.f32 %v416, %v485
    %v487 = vpop.f32.mrf.mxu0
    %488 = vdwg.mxu0
    %v489 = vmax.f32 %v486, 0.0
    %v490 = vld [vmem:[%s3] sm:$0xff]
    %v491 = vld [vmem:[%s3 + $0x8] sm:$0xff]
    %v492 = vld [vmem:[%s3 + $0x10] sm:$0xff]
    %v493 = vld [vmem:[%s3 + $0x18] sm:$0xff]
    %v494 = vld [vmem:[%s4] sm:$0x1]
    %v496 = vlaneseq
    %v497 = vshrl.u32 %v496, 7
    %v498 = vsub.s32 0, %v497
    %v499 = vrot.slane %v494, %v498
    %vm501 = vcmask 261120
    %v503 = vsel %vm501, %v489, 0
    %505 = vmatprep.subr.mxu0 0.0
    %506 = vmatpush1.msra.mxu0 0.0
    %507 = vmatprep.subr.mxu0 0.0
    %508 = vmatpush1.msra.mxu0 0.0
    %509 = vmatprep.subr.mxu0 0.0
    %510 = vmatpush1.msra.mxu0 0.0
    %511 = vmatprep.subr.mxu0 0.0
    %512 = vmatpush1.msra.mxu0 0.0
    %513 = vmatprep.subr.mxu0 0.0
    %514 = vmatpush1.msra.mxu0 0.0
    %515 = vmatprep.subr.mxu0 0.0
    %516 = vmatpush1.msra.mxu0 0.0
    %517 = vmatprep.subr.mxu0 0.0
    %518 = vmatpush1.msra.mxu0 0.0
    %519 = vmatprep.subr.mxu0 0.0
    %520 = vmatpush1.msra.mxu0 0.0
    %521 = vmatprep.subr.mxu0 0.0
    %522 = vmatpush1.msra.mxu0 0.0
    %523 = vmatprep.subr.mxu0 0.0
    %524 = vmatpush1.msra.mxu0 0.0
    %525 = vmatprep.subr.mxu0 0.0
    %526 = vmatpush1.msra.mxu0 0.0
    %527 = vmatprep.subr.mxu0 0.0
    %528 = vmatpush1.msra.mxu0 0.0
    %529 = vmatprep.subr.mxu0 0.0
    %530 = vmatpush1.msra.mxu0 %v493
    %531 = vmatprep.subr.mxu0 0.0
    %532 = vmatpush1.msra.mxu0 %v492
    %533 = vmatprep.subr.mxu0 0.0
    %534 = vmatpush1.msra.mxu0 %v491
    %535 = vmatprep.subr.mxu0 0.0
    %536 = vmatpush1.msra.mxu0 %v490
    %537 = vmatprep.subr.mxu0 0.0
    %538 = vmatpush2.msra.mxu0 0.0
    %539 = vmatprep.subr.mxu0 0.0
    %540 = vmatpush2.msra.mxu0 0.0
    %541 = vmatprep.subr.mxu0 0.0
    %542 = vmatpush2.msra.mxu0 0.0
    %543 = vmatprep.subr.mxu0 0.0
    %544 = vmatpush2.msra.mxu0 0.0
    %545 = vmatprep.subr.mxu0 0.0
    %546 = vmatpush2.msra.mxu0 0.0
    %547 = vmatprep.subr.mxu0 0.0
    %548 = vmatpush2.msra.mxu0 0.0
    %549 = vmatprep.subr.mxu0 0.0
    %550 = vmatpush2.msra.mxu0 0.0
    %551 = vmatprep.subr.mxu0 0.0
    %552 = vmatpush2.msra.mxu0 0.0
    %553 = vmatprep.subr.mxu0 0.0
    %554 = vmatpush2.msra.mxu0 0.0
    %555 = vmatprep.subr.mxu0 0.0
    %556 = vmatpush2.msra.mxu0 0.0
    %557 = vmatprep.subr.mxu0 0.0
    %558 = vmatpush2.msra.mxu0 0.0
    %559 = vmatprep.subr.mxu0 0.0
    %560 = vmatpush2.msra.mxu0 0.0
    %561 = vmatprep.subr.mxu0 0.0
    %562 = vmatpush2.msra.mxu0 0.0
    %563 = vmatprep.subr.mxu0 0.0
    %564 = vmatpush2.msra.mxu0 0.0
    %565 = vmatprep.subr.mxu0 0.0
    %566 = vmatpush2.msra.mxu0 0.0
    %567 = vmatprep.subr.mxu0 0.0
    %568 = vmatpush2.msra.mxu0 0.0
    %569 = vmatprep.mubr.f32.mxu0 0.0
    %570 = vmatmul.mubr.f32.gmra.mxu0 %v503
    %v571 = vpop.f32.mrf.mxu0
    %v572 = vadd.f32 %v499, %v571
    %v573 = vpop.f32.mrf.mxu0
    %574 = vdwg.mxu0
    %v575 = vld [vmem:[%s5] sm:$0x3]
    %v576 = vmul.f32 %v575, 50.0
    %v577 = vtanh.pop %v576
    %v578 = vadd.f32 %v577, 1.0
    %v579 = vmul.f32 %v578, 0.5
    %580 = vst [vmem:[#allocation6] sm:$0x1] %v579
    %v581 = vlaneseq
    %v582 = vshrl.u32 %v581, 7
    %v583 = vsub.s32 1, %v582
    %v584 = vrot.slane %v579, %v583
    %v585 = vmul.f32 %v572, %v584
    %586 = vst [vmem:[#allocation2] sm:$0x3] %v585
    %vm587 = vcmask 254976
    %588 = vst.msk [vmem:[#allocation4] sm:$0x3] %vm587, %v489
    // Predicated region
    $region26: #{tpu_custom_call.1} parent=1 // pred_check
      _
    $region27: #{tpu_custom_call.1} parent=1 // pred_check_branch
      %590 = sbr.rel (0) target = $region29
    $region28: #{tpu_custom_call.1} parent=1 // pred_region
      %s592 = ssub.s32 32, 32
      %593 = vsyncadd [#allocation3], %s592
      %s595 = sshll.u32 [#allocation2], 4
      %s596 = int_to_ptr.vmem [resolvable:$true] %s595
      %598 = dma.vmem_to_hbm [thread:$0]  %s596, 32, %s6, [#allocation3]
    $region29: #{tpu_custom_call.1} parent=1 // pred_fallthru
      _
    // Predicated region
    $region30: #{tpu_custom_call.1} parent=1 // pred_check
      _
    $region31: #{tpu_custom_call.1} parent=1 // pred_check_branch
      %600 = sbr.rel (0) target = $region33
    $region32: #{tpu_custom_call.1} parent=1 // pred_region
      %s602 = ssub.s32 32, 32
      %603 = vsyncadd [#allocation5], %s602
      %s605 = sshll.u32 [#allocation4], 4
      %s606 = int_to_ptr.vmem [resolvable:$true] %s605
      %608 = dma.vmem_to_hbm [thread:$0]  %s606, 32, %s7, [#allocation5]
    $region33: #{tpu_custom_call.1} parent=1 // pred_fallthru
      _
    // Predicated region
    $region34: #{tpu_custom_call.1} parent=1 // pred_check
      _
    $region35: #{tpu_custom_call.1} parent=1 // pred_check_branch
      %610 = sbr.rel (0) target = $region37
    $region36: #{tpu_custom_call.1} parent=1 // pred_region
      %s612 = ssub.s32 16, 16
      %613 = vsyncadd [#allocation5], %s612
      %s615 = sshll.u32 [#allocation6], 4
      %s616 = int_to_ptr.vmem [resolvable:$true] %s615
      %618 = dma.vmem_to_hbm [thread:$0]  %s616, 16, %s8, [#allocation5]
    $region37: #{tpu_custom_call.1} parent=1 // pred_fallthru
      _
    // Predicated region
    $region38: #{tpu_custom_call.1} parent=1 // pred_check
      _
    $region39: #{tpu_custom_call.1} parent=1 // pred_check_branch
      %620 = sbr.rel (0) target = $region41
    $region40: #{tpu_custom_call.1} parent=1 // pred_region
      %621 = dma.done [#allocation3], 32
    $region41: #{tpu_custom_call.1} parent=1 // pred_fallthru
      _
    // Predicated region
    $region42: #{tpu_custom_call.1} parent=1 // pred_check
      _
    $region43: #{tpu_custom_call.1} parent=1 // pred_check_branch
      %623 = sbr.rel (0) target = $region45
    $region44: #{tpu_custom_call.1} parent=1 // pred_region
      %624 = dma.done [#allocation5], 32
    $region45: #{tpu_custom_call.1} parent=1 // pred_fallthru
      _
    // Predicated region
    $region46: #{tpu_custom_call.1} parent=1 // pred_check
      _
    $region47: #{tpu_custom_call.1} parent=1 // pred_check_branch
      %626 = sbr.rel (0) target = $region49
    $region48: #{tpu_custom_call.1} parent=1 // pred_region
      %627 = dma.done [#allocation5], 16
    $region49: #{tpu_custom_call.1} parent=1 // pred_fallthru
      _
    %628 = vsyncpa [#allocation3], 1
    %629 = vsyncpa [#allocation5], 1

</llo_original>
